<compile_context>
chip_gen: v7x
topology: tpu7x:2x2x1
jax: 0.10.0
libtpu: 0.0.40
codegen_flags: <defaults>
</compile_context>

<pallas_src>
import functools

import jax
import jax.numpy as jnp
from jax.experimental import pallas as pl
from jax.experimental.pallas import tpu as pltpu


def _fused_embed_project_kernel(ids_ref, tbl_ref, w_ref, o_ref):
    """One (tm, d_model) output tile: gather tm table rows + project, full K."""
    tm = ids_ref.shape[0]
    vocab = tbl_ref.shape[0]
    ids = ids_ref[...]                                          # (tm, 1) int32
    # Exact embedding gather as a one-hot MXU matmul: each output row selects
    # exactly one table row, so 0/1 selector x bf16 table -> f32 is lossless.
    onehot = (ids == jax.lax.broadcasted_iota(jnp.int32, (tm, vocab), 1)
              ).astype(tbl_ref.dtype)                           # (tm, vocab)
    emb = jnp.dot(onehot, tbl_ref[...],
                  preferred_element_type=jnp.float32)           # (tm, 768) f32
    out = jnp.dot(emb.astype(w_ref.dtype), w_ref[...],
                  preferred_element_type=jnp.float32)           # (tm, d_model)
    o_ref[...] = out.astype(o_ref.dtype)


def _fused_embed_project(ids_2d, table, w_proj, *, tm, vmem_limit_bytes):
    n_pad = ids_2d.shape[0]
    vocab, k = table.shape
    d = w_proj.shape[1]
    return pl.pallas_call(
        _fused_embed_project_kernel,
        out_shape=jax.ShapeDtypeStruct((n_pad, d), jnp.float32),
        grid_spec=pltpu.PrefetchScalarGridSpec(
            num_scalar_prefetch=0,
            grid=(n_pad // tm,),
            in_specs=[
                pl.BlockSpec((tm, 1), lambda i: (i, 0)),       # token-id tile
                pl.BlockSpec((vocab, k), lambda i: (0, 0)),    # table, VMEM-resident
                pl.BlockSpec((k, d), lambda i: (0, 0)),        # weight, VMEM-resident
            ],
            out_specs=pl.BlockSpec((tm, d), lambda i: (i, 0)),  # lane-dense output
        ),
        compiler_params=pltpu.CompilerParams(
            dimension_semantics=("parallel",),
            vmem_limit_bytes=vmem_limit_bytes,
        ),
    )(ids_2d, table, w_proj)


def _project_kernel(x_ref, w_ref, o_ref):
    o_ref[...] = jnp.dot(x_ref[...], w_ref[...],
                         preferred_element_type=jnp.float32).astype(o_ref.dtype)


def _project(x, w_proj, *, tm):
    n_pad, k = x.shape
    d = w_proj.shape[1]
    return pl.pallas_call(
        _project_kernel,
        out_shape=jax.ShapeDtypeStruct((n_pad, d), jnp.float32),
        grid_spec=pltpu.PrefetchScalarGridSpec(
            num_scalar_prefetch=0,
            grid=(n_pad // tm,),
            in_specs=[
                pl.BlockSpec((tm, k), lambda i: (i, 0)),       # full K per pass
                pl.BlockSpec((k, d), lambda i: (0, 0)),        # weight, VMEM-resident
            ],
            out_specs=pl.BlockSpec((tm, d), lambda i: (i, 0)),
        ),
        compiler_params=pltpu.CompilerParams(
            dimension_semantics=("parallel",),
        ),
    )(x, w_proj)


def _choose_tm(n, tm):
    """Shrink the row tile for tiny token counts; keep it a multiple of 8."""
    n8 = ((max(n, 1) + 7) // 8) * 8
    return max(8, min(tm, n8))


@functools.partial(jax.jit, static_argnames=("tm", "fuse_vmem_budget_bytes"))
def to_small_emb_forward(input_ids, emb_table, w_proj, *, tm=256,
                         fuse_vmem_budget_bytes=16 * 1024 * 1024):
    """JAX/Pallas equivalent of ToSmallEmb.forward.

    input_ids: (B, S) int32 token ids
    emb_table: (VOCAB, 768) frozen parent wte (bf16 recommended)
    w_proj:    (768, d_model) bias-free projection weight, pre-transposed ONCE
               at model-load time (PyTorch stores it as (d_model, 768))
    returns:   (B, S, d_model) float32
    """
    b, s = input_ids.shape
    vocab, k = emb_table.shape
    d = w_proj.shape[1]
    n = b * s
    tm_eff = _choose_tm(n, tm)
    n_pad = pl.cdiv(n, tm_eff) * tm_eff               # handle arbitrary B*S
    ids = jnp.pad(input_ids.reshape(-1).astype(jnp.int32), (0, n_pad - n))

    footprint = (vocab * k * emb_table.dtype.itemsize
                 + k * d * w_proj.dtype.itemsize)
    if footprint <= fuse_vmem_budget_bytes:
        # Headroom for double-buffered resident operands + io tiles; cap well
        # under v7x's 64 MiB physical VMEM.
        vmem_limit = int(min(60 * 1024 * 1024,
                             max(32 * 1024 * 1024, 2 * footprint + (16 << 20))))
        out = _fused_embed_project(ids.reshape(n_pad, 1), emb_table, w_proj,
                                   tm=tm_eff, vmem_limit_bytes=vmem_limit)
    else:
        # TODO(synk): for large vocabularies (table does not fit VMEM) a manual
        # per-row DMA gather would avoid the HBM round-trip of the (N, 768)
        # intermediate; here the gather stays in plain JAX (glue) and only the
        # projection runs in Pallas.
        emb = jnp.take(emb_table, ids, axis=0).astype(w_proj.dtype)
        out = _project(emb, w_proj, tm=tm_eff)
    return out[:n].reshape(b, s, d)


if __name__ == "__main__":
    # Small, deterministic synthetic parameters (module __init__ gives shapes:
    # parent wte dim = 768, projection 768 -> config.d_model).
    VOCAB = 256
    PARENT_DIM = 768
    D_MODEL = 128
    B, S = 2, 8

    key = jax.random.PRNGKey(0)
    k_ids, k_emb, k_w = jax.random.split(key, 3)

    input_ids = jax.random.randint(k_ids, (B, S), 0, VOCAB, dtype=jnp.int32)
    emb_table_f32 = jax.random.normal(k_emb, (VOCAB, PARENT_DIM), jnp.float32) * 0.02
    linear_w_f32 = jax.random.normal(k_w, (D_MODEL, PARENT_DIM), jnp.float32) * 0.02

    # One-time parameter relayout/cast at "model load" (not per forward):
    # frozen table -> bf16, weight -> (768, d_model) bf16.
    emb_table = emb_table_f32.astype(jnp.bfloat16)
    w_proj = jnp.asarray(linear_w_f32.T).astype(jnp.bfloat16)

    # Fused path (table VMEM-resident).
    out = to_small_emb_forward(input_ids, emb_table, w_proj)
    out = jax.block_until_ready(out)

    # Also exercise the non-fused (large-vocab) fallback path.
    out_unfused = to_small_emb_forward(input_ids, emb_table, w_proj,
                                       fuse_vmem_budget_bytes=0)
    out_unfused = jax.block_until_ready(out_unfused)

    # Full-precision reference on the same (bf16-quantized) parameters.
    tbl_f32 = emb_table.astype(jnp.float32)
    w_f32 = w_proj.astype(jnp.float32)
    ref = jnp.dot(jnp.take(tbl_f32, input_ids.reshape(-1), axis=0), w_f32,
                  precision=jax.lax.Precision.HIGHEST).reshape(B, S, D_MODEL)

    assert out.shape == (B, S, D_MODEL)
    assert jnp.allclose(out, ref, atol=1e-3, rtol=1e-3), \
        float(jnp.max(jnp.abs(out - ref)))
    assert jnp.allclose(out_unfused, ref, atol=1e-3, rtol=1e-3), \
        float(jnp.max(jnp.abs(out_unfused - ref)))

    print("KERNEL_OK")
</pallas_src>

<mosaic_0001>
module attributes {stable_mosaic.version = 11 : i64} {
  func.func @_fused_embed_project_kernel(%arg0: i32, %arg1: memref<16x1xi32, #tpu.memory_space<vmem>>, %arg2: memref<256x768xbf16, #tpu.memory_space<vmem>>, %arg3: memref<768x128xbf16, #tpu.memory_space<vmem>>, %arg4: memref<16x128xf32, #tpu.memory_space<vmem>>) attributes {dimension_semantics = [#tpu.dimension_semantics<parallel>], iteration_bounds = array<i64: 1>, scalar_prefetch = 0 : i64, scratch_operands = 0 : i64, tpu.core_type = #tpu.core_type<tc>, window_params = [{transform_indices = @transform_0, window_bounds = array<i64: 16, 1>}, {pipeline_mode = #tpu.pipeline_mode<synchronous>, transform_indices = @transform_1, window_bounds = array<i64: 256, 768>}, {pipeline_mode = #tpu.pipeline_mode<synchronous>, transform_indices = @transform_2, window_bounds = array<i64: 768, 128>}, {transform_indices = @transform_3, window_bounds = array<i64: 16, 128>}]} {
    %c0 = arith.constant 0 : index
    %c0_0 = arith.constant 0 : index
    %0 = vector.load %arg1[%c0, %c0_0] : memref<16x1xi32, #tpu.memory_space<vmem>>, vector<16x1xi32>
    %1 = tpu.iota {dimensions = array<i32: 1>} : vector<16x256xi32>
    %2 = vector.broadcast %0 : vector<16x1xi32> to vector<16x256xi32>
    %3 = arith.cmpi eq, %2, %1 : vector<16x256xi32>
    %4 = arith.extui %3 : vector<16x256xi1> to vector<16x256xi32>
    %5 = arith.sitofp %4 : vector<16x256xi32> to vector<16x256xf32>
    %6 = arith.truncf %5 : vector<16x256xf32> to vector<16x256xbf16>
    %c0_1 = arith.constant 0 : index
    %c0_2 = arith.constant 0 : index
    %7 = vector.load %arg2[%c0_1, %c0_2] : memref<256x768xbf16, #tpu.memory_space<vmem>>, vector<256x768xbf16>
    %cst = arith.constant dense<0.000000e+00> : vector<16x768xf32>
    %8 = tpu.matmul %6, %7, %cst {dimension_numbers = #tpu.dot_dimension_numbers<[1], [0], [0], [1], [0, 0, 1, 1], [], []>} : vector<16x256xbf16>, vector<256x768xbf16>, vector<16x768xf32> -> vector<16x768xf32>
    %9 = arith.truncf %8 : vector<16x768xf32> to vector<16x768xbf16>
    %c0_3 = arith.constant 0 : index
    %c0_4 = arith.constant 0 : index
    %10 = vector.load %arg3[%c0_3, %c0_4] : memref<768x128xbf16, #tpu.memory_space<vmem>>, vector<768x128xbf16>
    %cst_5 = arith.constant dense<0.000000e+00> : vector<16x128xf32>
    %11 = tpu.matmul %9, %10, %cst_5 {dimension_numbers = #tpu.dot_dimension_numbers<[1], [0], [0], [1], [0, 0, 1, 1], [], []>} : vector<16x768xbf16>, vector<768x128xbf16>, vector<16x128xf32> -> vector<16x128xf32>
    %c0_6 = arith.constant 0 : index
    %c0_7 = arith.constant 0 : index
    %12 = vector.load %arg4[%c0_6, %c0_7] : memref<16x128xf32, #tpu.memory_space<vmem>>, vector<16x128xf32>
    tpu.vector_store %arg4[%c0_6, %c0_7], %11 {strides = array<i32>} : memref<16x128xf32, #tpu.memory_space<vmem>>, vector<16x128xf32>,
    return
  }
  func.func @transform_0(%arg0: i32) -> (i32, i32) {
    %c0_i32 = arith.constant 0 : i32
    %c0_i32_0 = arith.constant 0 : i32
    return %arg0, %c0_i32 : i32, i32
  }
  func.func @transform_1(%arg0: i32) -> (i32, i32) {
    %c0_i32 = arith.constant 0 : i32
    %c0_i32_0 = arith.constant 0 : i32
    %c0_i32_1 = arith.constant 0 : i32
    return %c0_i32, %c0_i32_0 : i32, i32
  }
  func.func @transform_2(%arg0: i32) -> (i32, i32) {
    %c0_i32 = arith.constant 0 : i32
    %c0_i32_0 = arith.constant 0 : i32
    %c0_i32_1 = arith.constant 0 : i32
    return %c0_i32, %c0_i32_0 : i32, i32
  }
  func.func @transform_3(%arg0: i32) -> (i32, i32) {
    %c0_i32 = arith.constant 0 : i32
    %c0_i32_0 = arith.constant 0 : i32
    return %arg0, %c0_i32 : i32, i32
  }
}

</mosaic_0001>

<llo_original>
// kernel: to_small_emb_forward.1
$region0: #{to_small_emb_forward.1}
  #allocation0 [shape = 'u32[]', space=smem, size = 0x4, offset = 0x4, fixed_abs, tag = 'smem constant byte address 0x4 - core index']
  #allocation1 [shape = 'u32[144,128]{1,0:T(1,128)}', space=vmem, size = 0x12000, scoped, tag = 'internal scratch']
  %s0 = inlined_call_operand.vmem [shape: s32[16,1], index: 0, kind: input, shape index: {}]
  %s1 = inlined_call_operand.hbm [shape: bf16[256,768], index: 1, kind: input, shape index: {}]
  %s2 = inlined_call_operand.hbm [shape: bf16[768,128], index: 2, kind: input, shape index: {}]
  %s3 = inlined_call_operand.hbm [shape: f32[16,128], index: 3, kind: output, shape index: {}]
  %s4 = sld [smem:[#allocation0]]
  $region30: #{to_small_emb_forward.1} parent=0
    _
  %s6 = ssub.s32 1, %s4
  %s7 = scalar_select 0, %s6, %s4
  $region1: #{to_small_emb_forward.1} parent=0
    #allocation2 [shape = 'u8[393216]{0}', space=vmem, size = 0x60000, scoped, tag = 'input window, operand 1, single buffered']
    #allocation3 [shape = 's32[1]{0}', space=sflag, size = 0x4, scoped, tag = 'scoped memory for to_small_emb_forward.1']
    #allocation4 [shape = 's32[1]{0}', space=sflag, size = 0x4, scoped, tag = 'scoped memory for to_small_emb_forward.1']
    #allocation5 [shape = 'u8[196608]{0}', space=vmem, size = 0x30000, scoped, tag = 'input window, operand 2, single buffered']
    #allocation6 [shape = 's32[1]{0}', space=sflag, size = 0x4, scoped, tag = 'scoped memory for to_small_emb_forward.1']
    #allocation7 [shape = 'u8[8192]{0}', space=vmem, size = 0x2000, scoped, tag = 'output window, operand 0, single buffered']
    %8 = vsyncpa [#allocation3], 0
    %9 = vsyncpa [#allocation6], 0
    %10 = vsyncpa [#allocation4], 0
    // Predicated region
    $region2: #{to_small_emb_forward.1} parent=1 // pred_check
      _
    $region3: #{to_small_emb_forward.1} parent=1 // pred_check_branch
      %12 = sbr.rel (0) target = $region5
    $region4: #{to_small_emb_forward.1} parent=1 // pred_region
      _
    $region5: #{to_small_emb_forward.1} parent=1 // pred_fallthru
      _
    // Predicated region
    $region6: #{to_small_emb_forward.1} parent=1 // pred_check
      _
    $region7: #{to_small_emb_forward.1} parent=1 // pred_check_branch
      %14 = sbr.rel (0) target = $region9
    $region8: #{to_small_emb_forward.1} parent=1 // pred_region
      %s16 = ssub.s32 12288, 12288
      %17 = vsyncadd [#allocation3], %s16
      %s18 = sshll.u32 [#allocation2], 4
      %s19 = int_to_ptr.vmem [resolvable:$true] %s18
      %24 = dma.hbm_to_vmem [thread:$0]  %s1, 12288, %s19, [#allocation3], 384, 384, 24
    $region9: #{to_small_emb_forward.1} parent=1 // pred_fallthru
      _
    // Predicated region
    $region10: #{to_small_emb_forward.1} parent=1 // pred_check
      _
    $region11: #{to_small_emb_forward.1} parent=1 // pred_check_branch
      %26 = sbr.rel (0) target = $region13
    $region12: #{to_small_emb_forward.1} parent=1 // pred_region
      %s28 = ssub.s32 6144, 6144
      %29 = vsyncadd [#allocation6], %s28
      %s30 = sshll.u32 [#allocation5], 4
      %s31 = int_to_ptr.vmem [resolvable:$true] %s30
      %36 = dma.hbm_to_vmem [thread:$0]  %s2, 6144, %s31, [#allocation6], 64, 64, 4
    $region13: #{to_small_emb_forward.1} parent=1 // pred_fallthru
      _
    // Predicated region
    $region14: #{to_small_emb_forward.1} parent=1 // pred_check
      _
    $region15: #{to_small_emb_forward.1} parent=1 // pred_check_branch
      %38 = sbr.rel (0) target = $region17
    $region16: #{to_small_emb_forward.1} parent=1 // pred_region
      %39 = dma.done [#allocation3], 12288
    $region17: #{to_small_emb_forward.1} parent=1 // pred_fallthru
      _
    // Predicated region
    $region18: #{to_small_emb_forward.1} parent=1 // pred_check
      _
    $region19: #{to_small_emb_forward.1} parent=1 // pred_check_branch
      %41 = sbr.rel (0) target = $region21
    $region20: #{to_small_emb_forward.1} parent=1 // pred_region
      %42 = dma.done [#allocation6], 6144
    $region21: #{to_small_emb_forward.1} parent=1 // pred_fallthru
      _
    %v44 = vld [vmem:[%s0] sm:$0xff]
    %v45 = vld [vmem:[%s0 + $0x8] sm:$0xff]
    %v46 = vlaneseq
    %v47 = vand.u32 %v46, 127
    %v48 = vadd.s32 %v47, 128
    %49 = vset.pattern.permute.xlu0 0
    %50 = vperm.xlu0 %49, %v44
    %v51 = vpop.permute.xlu0 %50
    %52 = vset.pattern.permute.xlu0 0
    %53 = vperm.xlu0 %52, %v45
    %v54 = vpop.permute.xlu0 %53
    %vm55 = vcmp.eq.s32.totalorder %v51, %v47
    %vm56 = vcmp.eq.s32.totalorder %v51, %v48
    %vm57 = vcmp.eq.s32.totalorder %v54, %v47
    %vm58 = vcmp.eq.s32.totalorder %v54, %v48
    %v59 = vsel %vm55, 1, 0
    %v60 = vsel %vm56, 1, 0
    %v61 = vsel %vm57, 1, 0
    %v62 = vsel %vm58, 1, 0
    %v63 = vcvt.s32.f32 %v59
    %v64 = vcvt.s32.f32 %v60
    %v65 = vcvt.s32.f32 %v61
    %v66 = vcvt.s32.f32 %v62
    %v67 = vpack.c.bf16 %v65, %v63
    %v68 = vpack.c.bf16 %v66, %v64
    %v69 = vld [vmem:[#allocation2] sm:$0xff]
    %v70 = vld [vmem:[#allocation2 + $0x8] sm:$0xff]
    %v71 = vld [vmem:[#allocation2 + $0x10] sm:$0xff]
    %v72 = vld [vmem:[#allocation2 + $0x18] sm:$0xff]
    %v73 = vld [vmem:[#allocation2 + $0x20] sm:$0xff]
    %v74 = vld [vmem:[#allocation2 + $0x28] sm:$0xff]
    %v75 = vld [vmem:[#allocation2 + $0x30] sm:$0xff]
    %v76 = vld [vmem:[#allocation2 + $0x38] sm:$0xff]
    %v77 = vld [vmem:[#allocation2 + $0x40] sm:$0xff]
    %v78 = vld [vmem:[#allocation2 + $0x48] sm:$0xff]
    %v79 = vld [vmem:[#allocation2 + $0x50] sm:$0xff]
    %v80 = vld [vmem:[#allocation2 + $0x58] sm:$0xff]
    %v81 = vld [vmem:[#allocation2 + $0x60] sm:$0xff]
    %v82 = vld [vmem:[#allocation2 + $0x68] sm:$0xff]
    %v83 = vld [vmem:[#allocation2 + $0x70] sm:$0xff]
    %v84 = vld [vmem:[#allocation2 + $0x78] sm:$0xff]
    %v85 = vld [vmem:[#allocation2 + $0x80] sm:$0xff]
    %v86 = vld [vmem:[#allocation2 + $0x88] sm:$0xff]
    %v87 = vld [vmem:[#allocation2 + $0x90] sm:$0xff]
    %v88 = vld [vmem:[#allocation2 + $0x98] sm:$0xff]
    %v89 = vld [vmem:[#allocation2 + $0xa0] sm:$0xff]
    %v90 = vld [vmem:[#allocation2 + $0xa8] sm:$0xff]
    %v91 = vld [vmem:[#allocation2 + $0xb0] sm:$0xff]
    %v92 = vld [vmem:[#allocation2 + $0xb8] sm:$0xff]
    %v93 = vld [vmem:[#allocation2 + $0xc0] sm:$0xff]
    %v94 = vld [vmem:[#allocation2 + $0xc8] sm:$0xff]
    %v95 = vld [vmem:[#allocation2 + $0xd0] sm:$0xff]
    %v96 = vld [vmem:[#allocation2 + $0xd8] sm:$0xff]
    %v97 = vld [vmem:[#allocation2 + $0xe0] sm:$0xff]
    %v98 = vld [vmem:[#allocation2 + $0xe8] sm:$0xff]
    %v99 = vld [vmem:[#allocation2 + $0xf0] sm:$0xff]
    %v100 = vld [vmem:[#allocation2 + $0xf8] sm:$0xff]
    %v101 = vld [vmem:[#allocation2 + $0x100] sm:$0xff]
    %v102 = vld [vmem:[#allocation2 + $0x108] sm:$0xff]
    %v103 = vld [vmem:[#allocation2 + $0x110] sm:$0xff]
    %v104 = vld [vmem:[#allocation2 + $0x118] sm:$0xff]
    %v105 = vld [vmem:[#allocation2 + $0x120] sm:$0xff]
    %v106 = vld [vmem:[#allocation2 + $0x128] sm:$0xff]
    %v107 = vld [vmem:[#allocation2 + $0x130] sm:$0xff]
    %v108 = vld [vmem:[#allocation2 + $0x138] sm:$0xff]
    %v109 = vld [vmem:[#allocation2 + $0x140] sm:$0xff]
    %v110 = vld [vmem:[#allocation2 + $0x148] sm:$0xff]
    %v111 = vld [vmem:[#allocation2 + $0x150] sm:$0xff]
    %v112 = vld [vmem:[#allocation2 + $0x158] sm:$0xff]
    %v113 = vld [vmem:[#allocation2 + $0x160] sm:$0xff]
    %v114 = vld [vmem:[#allocation2 + $0x168] sm:$0xff]
    %v115 = vld [vmem:[#allocation2 + $0x170] sm:$0xff]
    %v116 = vld [vmem:[#allocation2 + $0x178] sm:$0xff]
    %v117 = vld [vmem:[#allocation2 + $0x180] sm:$0xff]
    %v118 = vld [vmem:[#allocation2 + $0x188] sm:$0xff]
    %v119 = vld [vmem:[#allocation2 + $0x190] sm:$0xff]
    %v120 = vld [vmem:[#allocation2 + $0x198] sm:$0xff]
    %v121 = vld [vmem:[#allocation2 + $0x1a0] sm:$0xff]
    %v122 = vld [vmem:[#allocation2 + $0x1a8] sm:$0xff]
    %v123 = vld [vmem:[#allocation2 + $0x1b0] sm:$0xff]
    %v124 = vld [vmem:[#allocation2 + $0x1b8] sm:$0xff]
    %v125 = vld [vmem:[#allocation2 + $0x1c0] sm:$0xff]
    %v126 = vld [vmem:[#allocation2 + $0x1c8] sm:$0xff]
    %v127 = vld [vmem:[#allocation2 + $0x1d0] sm:$0xff]
    %v128 = vld [vmem:[#allocation2 + $0x1d8] sm:$0xff]
    %v129 = vld [vmem:[#allocation2 + $0x1e0] sm:$0xff]
    %v130 = vld [vmem:[#allocation2 + $0x1e8] sm:$0xff]
    %v131 = vld [vmem:[#allocation2 + $0x1f0] sm:$0xff]
    %v132 = vld [vmem:[#allocation2 + $0x1f8] sm:$0xff]
    %v133 = vld [vmem:[#allocation2 + $0x200] sm:$0xff]
    %v134 = vld [vmem:[#allocation2 + $0x208] sm:$0xff]
    %v135 = vld [vmem:[#allocation2 + $0x210] sm:$0xff]
    %v136 = vld [vmem:[#allocation2 + $0x218] sm:$0xff]
    %v137 = vld [vmem:[#allocation2 + $0x220] sm:$0xff]
    %v138 = vld [vmem:[#allocation2 + $0x228] sm:$0xff]
    %v139 = vld [vmem:[#allocation2 + $0x230] sm:$0xff]
    %v140 = vld [vmem:[#allocation2 + $0x238] sm:$0xff]
    %v141 = vld [vmem:[#allocation2 + $0x240] sm:$0xff]
    %v142 = vld [vmem:[#allocation2 + $0x248] sm:$0xff]
    %v143 = vld [vmem:[#allocation2 + $0x250] sm:$0xff]
    %v144 = vld [vmem:[#allocation2 + $0x258] sm:$0xff]
    %v145 = vld [vmem:[#allocation2 + $0x260] sm:$0xff]
    %v146 = vld [vmem:[#allocation2 + $0x268] sm:$0xff]
    %v147 = vld [vmem:[#allocation2 + $0x270] sm:$0xff]
    %v148 = vld [vmem:[#allocation2 + $0x278] sm:$0xff]
    %v149 = vld [vmem:[#allocation2 + $0x280] sm:$0xff]
    %v150 = vld [vmem:[#allocation2 + $0x288] sm:$0xff]
    %v151 = vld [vmem:[#allocation2 + $0x290] sm:$0xff]
    %v152 = vld [vmem:[#allocation2 + $0x298] sm:$0xff]
    %v153 = vld [vmem:[#allocation2 + $0x2a0] sm:$0xff]
    %v154 = vld [vmem:[#allocation2 + $0x2a8] sm:$0xff]
    %v155 = vld [vmem:[#allocation2 + $0x2b0] sm:$0xff]
    %v156 = vld [vmem:[#allocation2 + $0x2b8] sm:$0xff]
    %v157 = vld [vmem:[#allocation2 + $0x2c0] sm:$0xff]
    %v158 = vld [vmem:[#allocation2 + $0x2c8] sm:$0xff]
    %v159 = vld [vmem:[#allocation2 + $0x2d0] sm:$0xff]
    %v160 = vld [vmem:[#allocation2 + $0x2d8] sm:$0xff]
    %v161 = vld [vmem:[#allocation2 + $0x2e0] sm:$0xff]
    %v162 = vld [vmem:[#allocation2 + $0x2e8] sm:$0xff]
    %v163 = vld [vmem:[#allocation2 + $0x2f0] sm:$0xff]
    %v164 = vld [vmem:[#allocation2 + $0x2f8] sm:$0xff]
    %v261 = vunpack.c.l.b16 %v69
    %v262 = vunpack.c.h.b16 %v69
    %v263 = vunpack.c.l.b16 %v70
    %v264 = vunpack.c.h.b16 %v70
    %v265 = vunpack.c.l.b16 %v71
    %v266 = vunpack.c.h.b16 %v71
    %v267 = vunpack.c.l.b16 %v72
    %v268 = vunpack.c.h.b16 %v72
    %v269 = vunpack.c.l.b16 %v73
    %v270 = vunpack.c.h.b16 %v73
    %v271 = vunpack.c.l.b16 %v74
    %v272 = vunpack.c.h.b16 %v74
    %v273 = vunpack.c.l.b16 %v75
    %v274 = vunpack.c.h.b16 %v75
    %v275 = vunpack.c.l.b16 %v76
    %v276 = vunpack.c.h.b16 %v76
    %v277 = vunpack.c.l.b16 %v77
    %v278 = vunpack.c.h.b16 %v77
    %v279 = vunpack.c.l.b16 %v78
    %v280 = vunpack.c.h.b16 %v78
    %v281 = vunpack.c.l.b16 %v79
    %v282 = vunpack.c.h.b16 %v79
    %v283 = vunpack.c.l.b16 %v80
    %v284 = vunpack.c.h.b16 %v80
    %v285 = vunpack.c.l.b16 %v81
    %v286 = vunpack.c.h.b16 %v81
    %v287 = vunpack.c.l.b16 %v82
    %v288 = vunpack.c.h.b16 %v82
    %v289 = vunpack.c.l.b16 %v83
    %v290 = vunpack.c.h.b16 %v83
    %v291 = vunpack.c.l.b16 %v84
    %v292 = vunpack.c.h.b16 %v84
    %v293 = vunpack.c.l.b16 %v85
    %v294 = vunpack.c.h.b16 %v85
    %v295 = vunpack.c.l.b16 %v86
    %v296 = vunpack.c.h.b16 %v86
    %v297 = vunpack.c.l.b16 %v87
    %v298 = vunpack.c.h.b16 %v87
    %v299 = vunpack.c.l.b16 %v88
    %v300 = vunpack.c.h.b16 %v88
    %v301 = vunpack.c.l.b16 %v89
    %v302 = vunpack.c.h.b16 %v89
    %v303 = vunpack.c.l.b16 %v90
    %v304 = vunpack.c.h.b16 %v90
    %v305 = vunpack.c.l.b16 %v91
    %v306 = vunpack.c.h.b16 %v91
    %v307 = vunpack.c.l.b16 %v92
    %v308 = vunpack.c.h.b16 %v92
    %v309 = vunpack.c.l.b16 %v93
    %v310 = vunpack.c.h.b16 %v93
    %v311 = vunpack.c.l.b16 %v94
    %v312 = vunpack.c.h.b16 %v94
    %v313 = vunpack.c.l.b16 %v95
    %v314 = vunpack.c.h.b16 %v95
    %v315 = vunpack.c.l.b16 %v96
    %v316 = vunpack.c.h.b16 %v96
    %v317 = vunpack.c.l.b16 %v97
    %v318 = vunpack.c.h.b16 %v97
    %v319 = vunpack.c.l.b16 %v98
    %v320 = vunpack.c.h.b16 %v98
    %v321 = vunpack.c.l.b16 %v99
    %v322 = vunpack.c.h.b16 %v99
    %v323 = vunpack.c.l.b16 %v100
    %v324 = vunpack.c.h.b16 %v100
    %v325 = vunpack.c.l.b16 %v101
    %v326 = vunpack.c.h.b16 %v101
    %v327 = vunpack.c.l.b16 %v102
    %v328 = vunpack.c.h.b16 %v102
    %v329 = vunpack.c.l.b16 %v103
    %v330 = vunpack.c.h.b16 %v103
    %v331 = vunpack.c.l.b16 %v104
    %v332 = vunpack.c.h.b16 %v104
    %v333 = vunpack.c.l.b16 %v105
    %v334 = vunpack.c.h.b16 %v105
    %v335 = vunpack.c.l.b16 %v106
    %v336 = vunpack.c.h.b16 %v106
    %v337 = vunpack.c.l.b16 %v107
    %v338 = vunpack.c.h.b16 %v107
    %v339 = vunpack.c.l.b16 %v108
    %v340 = vunpack.c.h.b16 %v108
    %v341 = vunpack.c.l.b16 %v109
    %v342 = vunpack.c.h.b16 %v109
    %v343 = vunpack.c.l.b16 %v110
    %v344 = vunpack.c.h.b16 %v110
    %v345 = vunpack.c.l.b16 %v111
    %v346 = vunpack.c.h.b16 %v111
    %v347 = vunpack.c.l.b16 %v112
    %v348 = vunpack.c.h.b16 %v112
    %v349 = vunpack.c.l.b16 %v113
    %v350 = vunpack.c.h.b16 %v113
    %v351 = vunpack.c.l.b16 %v114
    %v352 = vunpack.c.h.b16 %v114
    %v353 = vunpack.c.l.b16 %v115
    %v354 = vunpack.c.h.b16 %v115
    %v355 = vunpack.c.l.b16 %v116
    %v356 = vunpack.c.h.b16 %v116
    %v357 = vunpack.c.l.b16 %v117
    %v358 = vunpack.c.h.b16 %v117
    %v359 = vunpack.c.l.b16 %v118
    %v360 = vunpack.c.h.b16 %v118
    %v361 = vunpack.c.l.b16 %v119
    %v362 = vunpack.c.h.b16 %v119
    %v363 = vunpack.c.l.b16 %v120
    %v364 = vunpack.c.h.b16 %v120
    %v365 = vunpack.c.l.b16 %v121
    %v366 = vunpack.c.h.b16 %v121
    %v367 = vunpack.c.l.b16 %v122
    %v368 = vunpack.c.h.b16 %v122
    %v369 = vunpack.c.l.b16 %v123
    %v370 = vunpack.c.h.b16 %v123
    %v371 = vunpack.c.l.b16 %v124
    %v372 = vunpack.c.h.b16 %v124
    %v373 = vunpack.c.l.b16 %v125
    %v374 = vunpack.c.h.b16 %v125
    %v375 = vunpack.c.l.b16 %v126
    %v376 = vunpack.c.h.b16 %v126
    %v377 = vunpack.c.l.b16 %v127
    %v378 = vunpack.c.h.b16 %v127
    %v379 = vunpack.c.l.b16 %v128
    %v380 = vunpack.c.h.b16 %v128
    %v381 = vunpack.c.l.b16 %v129
    %v382 = vunpack.c.h.b16 %v129
    %v383 = vunpack.c.l.b16 %v130
    %v384 = vunpack.c.h.b16 %v130
    %v385 = vunpack.c.l.b16 %v131
    %v386 = vunpack.c.h.b16 %v131
    %v387 = vunpack.c.l.b16 %v132
    %v388 = vunpack.c.h.b16 %v132
    %v389 = vunpack.c.l.b16 %v133
    %v390 = vunpack.c.h.b16 %v133
    %v391 = vunpack.c.l.b16 %v134
    %v392 = vunpack.c.h.b16 %v134
    %v393 = vunpack.c.l.b16 %v135
    %v394 = vunpack.c.h.b16 %v135
    %v395 = vunpack.c.l.b16 %v136
    %v396 = vunpack.c.h.b16 %v136
    %v397 = vunpack.c.l.b16 %v137
    %v398 = vunpack.c.h.b16 %v137
    %v399 = vunpack.c.l.b16 %v138
    %v400 = vunpack.c.h.b16 %v138
    %v401 = vunpack.c.l.b16 %v139
    %v402 = vunpack.c.h.b16 %v139
    %v403 = vunpack.c.l.b16 %v140
    %v404 = vunpack.c.h.b16 %v140
    %v405 = vunpack.c.l.b16 %v141
    %v406 = vunpack.c.h.b16 %v141
    %v407 = vunpack.c.l.b16 %v142
    %v408 = vunpack.c.h.b16 %v142
    %v409 = vunpack.c.l.b16 %v143
    %v410 = vunpack.c.h.b16 %v143
    %v411 = vunpack.c.l.b16 %v144
    %v412 = vunpack.c.h.b16 %v144
    %v413 = vunpack.c.l.b16 %v145
    %v414 = vunpack.c.h.b16 %v145
    %v415 = vunpack.c.l.b16 %v146
    %v416 = vunpack.c.h.b16 %v146
    %v417 = vunpack.c.l.b16 %v147
    %v418 = vunpack.c.h.b16 %v147
    %v419 = vunpack.c.l.b16 %v148
    %v420 = vunpack.c.h.b16 %v148
    %v421 = vunpack.c.l.b16 %v149
    %v422 = vunpack.c.h.b16 %v149
    %v423 = vunpack.c.l.b16 %v150
    %v424 = vunpack.c.h.b16 %v150
    %v425 = vunpack.c.l.b16 %v151
    %v426 = vunpack.c.h.b16 %v151
    %v427 = vunpack.c.l.b16 %v152
    %v428 = vunpack.c.h.b16 %v152
    %v429 = vunpack.c.l.b16 %v153
    %v430 = vunpack.c.h.b16 %v153
    %v431 = vunpack.c.l.b16 %v154
    %v432 = vunpack.c.h.b16 %v154
    %v433 = vunpack.c.l.b16 %v155
    %v434 = vunpack.c.h.b16 %v155
    %v435 = vunpack.c.l.b16 %v156
    %v436 = vunpack.c.h.b16 %v156
    %v437 = vunpack.c.l.b16 %v157
    %v438 = vunpack.c.h.b16 %v157
    %v439 = vunpack.c.l.b16 %v158
    %v440 = vunpack.c.h.b16 %v158
    %v441 = vunpack.c.l.b16 %v159
    %v442 = vunpack.c.h.b16 %v159
    %v443 = vunpack.c.l.b16 %v160
    %v444 = vunpack.c.h.b16 %v160
    %v445 = vunpack.c.l.b16 %v161
    %v446 = vunpack.c.h.b16 %v161
    %v447 = vunpack.c.l.b16 %v162
    %v448 = vunpack.c.h.b16 %v162
    %v449 = vunpack.c.l.b16 %v163
    %v450 = vunpack.c.h.b16 %v163
    %v451 = vunpack.c.l.b16 %v164
    %v452 = vunpack.c.h.b16 %v164
    %v453 = vpack.c.b16 %v267, %v261
    %v454 = vpack.c.b16 %v268, %v262
    %v455 = vpack.c.b16 %v269, %v263
    %v456 = vpack.c.b16 %v270, %v264
    %v457 = vpack.c.b16 %v271, %v265
    %v458 = vpack.c.b16 %v272, %v266
    %v459 = vpack.c.b16 %v279, %v273
    %v460 = vpack.c.b16 %v280, %v274
    %v461 = vpack.c.b16 %v281, %v275
    %v462 = vpack.c.b16 %v282, %v276
    %v463 = vpack.c.b16 %v283, %v277
    %v464 = vpack.c.b16 %v284, %v278
    %v465 = vpack.c.b16 %v291, %v285
    %v466 = vpack.c.b16 %v292, %v286
    %v467 = vpack.c.b16 %v293, %v287
    %v468 = vpack.c.b16 %v294, %v288
    %v469 = vpack.c.b16 %v295, %v289
    %v470 = vpack.c.b16 %v296, %v290
    %v471 = vpack.c.b16 %v303, %v297
    %v472 = vpack.c.b16 %v304, %v298
    %v473 = vpack.c.b16 %v305, %v299
    %v474 = vpack.c.b16 %v306, %v300
    %v475 = vpack.c.b16 %v307, %v301
    %v476 = vpack.c.b16 %v308, %v302
    %v477 = vpack.c.b16 %v315, %v309
    %v478 = vpack.c.b16 %v316, %v310
    %v479 = vpack.c.b16 %v317, %v311
    %v480 = vpack.c.b16 %v318, %v312
    %v481 = vpack.c.b16 %v319, %v313
    %v482 = vpack.c.b16 %v320, %v314
    %v483 = vpack.c.b16 %v327, %v321
    %v484 = vpack.c.b16 %v328, %v322
    %v485 = vpack.c.b16 %v329, %v323
    %v486 = vpack.c.b16 %v330, %v324
    %v487 = vpack.c.b16 %v331, %v325
    %v488 = vpack.c.b16 %v332, %v326
    %v489 = vpack.c.b16 %v339, %v333
    %v490 = vpack.c.b16 %v340, %v334
    %v491 = vpack.c.b16 %v341, %v335
    %v492 = vpack.c.b16 %v342, %v336
    %v493 = vpack.c.b16 %v343, %v337
    %v494 = vpack.c.b16 %v344, %v338
    %v495 = vpack.c.b16 %v351, %v345
    %v496 = vpack.c.b16 %v352, %v346
    %v497 = vpack.c.b16 %v353, %v347
    %v498 = vpack.c.b16 %v354, %v348
    %v499 = vpack.c.b16 %v355, %v349
    %v500 = vpack.c.b16 %v356, %v350
    %v501 = vpack.c.b16 %v363, %v357
    %v502 = vpack.c.b16 %v364, %v358
    %v503 = vpack.c.b16 %v365, %v359
    %v504 = vpack.c.b16 %v366, %v360
    %v505 = vpack.c.b16 %v367, %v361
    %v506 = vpack.c.b16 %v368, %v362
    %v507 = vpack.c.b16 %v375, %v369
    %v508 = vpack.c.b16 %v376, %v370
    %v509 = vpack.c.b16 %v377, %v371
    %v510 = vpack.c.b16 %v378, %v372
    %v511 = vpack.c.b16 %v379, %v373
    %v512 = vpack.c.b16 %v380, %v374
    %v513 = vpack.c.b16 %v387, %v381
    %v514 = vpack.c.b16 %v388, %v382
    %v515 = vpack.c.b16 %v389, %v383
    %v516 = vpack.c.b16 %v390, %v384
    %v517 = vpack.c.b16 %v391, %v385
    %v518 = vpack.c.b16 %v392, %v386
    %v519 = vpack.c.b16 %v399, %v393
    %v520 = vpack.c.b16 %v400, %v394
    %v521 = vpack.c.b16 %v401, %v395
    %v522 = vpack.c.b16 %v402, %v396
    %v523 = vpack.c.b16 %v403, %v397
    %v524 = vpack.c.b16 %v404, %v398
    %v525 = vpack.c.b16 %v411, %v405
    %v526 = vpack.c.b16 %v412, %v406
    %v527 = vpack.c.b16 %v413, %v407
    %v528 = vpack.c.b16 %v414, %v408
    %v529 = vpack.c.b16 %v415, %v409
    %v530 = vpack.c.b16 %v416, %v410
    %v531 = vpack.c.b16 %v423, %v417
    %v532 = vpack.c.b16 %v424, %v418
    %v533 = vpack.c.b16 %v425, %v419
    %v534 = vpack.c.b16 %v426, %v420
    %v535 = vpack.c.b16 %v427, %v421
    %v536 = vpack.c.b16 %v428, %v422
    %v537 = vpack.c.b16 %v435, %v429
    %v538 = vpack.c.b16 %v436, %v430
    %v539 = vpack.c.b16 %v437, %v431
    %v540 = vpack.c.b16 %v438, %v432
    %v541 = vpack.c.b16 %v439, %v433
    %v542 = vpack.c.b16 %v440, %v434
    %v543 = vpack.c.b16 %v447, %v441
    %v544 = vpack.c.b16 %v448, %v442
    %v545 = vpack.c.b16 %v449, %v443
    %v546 = vpack.c.b16 %v450, %v444
    %v547 = vpack.c.b16 %v451, %v445
    %v548 = vpack.c.b16 %v452, %v446
    %645 = vmatprep.subr.bf16.mxu0 %v454
    %646 = vmatpush1.bf16.msra.mxu0 %v453
    %647 = vmatprep.subr.bf16.mxu0 %v460
    %648 = vmatpush1.bf16.msra.mxu0 %v459
    %649 = vmatprep.subr.bf16.mxu0 %v466
    %650 = vmatpush1.bf16.msra.mxu0 %v465
    %651 = vmatprep.subr.bf16.mxu0 %v472
    %652 = vmatpush1.bf16.msra.mxu0 %v471
    %653 = vmatprep.subr.bf16.mxu0 %v478
    %654 = vmatpush1.bf16.msra.mxu0 %v477
    %655 = vmatprep.subr.bf16.mxu0 %v484
    %656 = vmatpush1.bf16.msra.mxu0 %v483
    %657 = vmatprep.subr.bf16.mxu0 %v490
    %658 = vmatpush1.bf16.msra.mxu0 %v489
    %659 = vmatprep.subr.bf16.mxu0 %v496
    %660 = vmatpush1.bf16.msra.mxu0 %v495
    %661 = vmatprep.subr.bf16.mxu0 %v502
    %662 = vmatpush1.bf16.msra.mxu0 %v501
    %663 = vmatprep.subr.bf16.mxu0 %v508
    %664 = vmatpush1.bf16.msra.mxu0 %v507
    %665 = vmatprep.subr.bf16.mxu0 %v514
    %666 = vmatpush1.bf16.msra.mxu0 %v513
    %667 = vmatprep.subr.bf16.mxu0 %v520
    %668 = vmatpush1.bf16.msra.mxu0 %v519
    %669 = vmatprep.subr.bf16.mxu0 %v526
    %670 = vmatpush1.bf16.msra.mxu0 %v525
    %671 = vmatprep.subr.bf16.mxu0 %v532
    %672 = vmatpush1.bf16.msra.mxu0 %v531
    %673 = vmatprep.subr.bf16.mxu0 %v538
    %674 = vmatpush1.bf16.msra.mxu0 %v537
    %675 = vmatprep.subr.bf16.mxu0 %v544
    %676 = vmatpush1.bf16.msra.mxu0 %v543
    %677 = vmatprep.mubr.bf16.mxu0 %v68
    %678 = vmatmul.mubr.bf16.gmra.mrb[0].mxu0 %v67
    %v679 = vpop.f32.mrb[0].mxu0
    %v680 = vadd.f32 0.0, %v679
    %v681 = vpop.f32.mrb[0].mxu0
    %v682 = vadd.f32 0.0, %v681
    %v683 = vpop.f32.mrb[0].mxu0
    %v684 = vadd.f32 0.0, %v683
    %v685 = vpop.f32.mrb[0].mxu0
    %v686 = vadd.f32 0.0, %v685
    %687 = vdwg.mxu0
    %688 = vmatprep.subr.bf16.mxu0 %v456
    %689 = vmatpush1.bf16.msra.mxu0 %v455
    %690 = vmatprep.subr.bf16.mxu0 %v462
    %691 = vmatpush1.bf16.msra.mxu0 %v461
    %692 = vmatprep.subr.bf16.mxu0 %v468
    %693 = vmatpush1.bf16.msra.mxu0 %v467
    %694 = vmatprep.subr.bf16.mxu0 %v474
    %695 = vmatpush1.bf16.msra.mxu0 %v473
    %696 = vmatprep.subr.bf16.mxu0 %v480
    %697 = vmatpush1.bf16.msra.mxu0 %v479
    %698 = vmatprep.subr.bf16.mxu0 %v486
    %699 = vmatpush1.bf16.msra.mxu0 %v485
    %700 = vmatprep.subr.bf16.mxu0 %v492
    %701 = vmatpush1.bf16.msra.mxu0 %v491
    %702 = vmatprep.subr.bf16.mxu0 %v498
    %703 = vmatpush1.bf16.msra.mxu0 %v497
    %704 = vmatprep.subr.bf16.mxu0 %v504
    %705 = vmatpush1.bf16.msra.mxu0 %v503
    %706 = vmatprep.subr.bf16.mxu0 %v510
    %707 = vmatpush1.bf16.msra.mxu0 %v509
    %708 = vmatprep.subr.bf16.mxu0 %v516
    %709 = vmatpush1.bf16.msra.mxu0 %v515
    %710 = vmatprep.subr.bf16.mxu0 %v522
    %711 = vmatpush1.bf16.msra.mxu0 %v521
    %712 = vmatprep.subr.bf16.mxu0 %v528
    %713 = vmatpush1.bf16.msra.mxu0 %v527
    %714 = vmatprep.subr.bf16.mxu0 %v534
    %715 = vmatpush1.bf16.msra.mxu0 %v533
    %716 = vmatprep.subr.bf16.mxu0 %v540
    %717 = vmatpush1.bf16.msra.mxu0 %v539
    %718 = vmatprep.subr.bf16.mxu0 %v546
    %719 = vmatpush1.bf16.msra.mxu0 %v545
    %720 = vmatprep.mubr.bf16.mxu0 %v68
    %721 = vmatmul.mubr.bf16.gmra.mrb[0].mxu0 %v67
    %v722 = vpop.f32.mrb[0].mxu0
    %v723 = vadd.f32 0.0, %v722
    %v724 = vpop.f32.mrb[0].mxu0
    %v725 = vadd.f32 0.0, %v724
    %v726 = vpop.f32.mrb[0].mxu0
    %v727 = vadd.f32 0.0, %v726
    %v728 = vpop.f32.mrb[0].mxu0
    %v729 = vadd.f32 0.0, %v728
    %730 = vdwg.mxu0
    %731 = vmatprep.subr.bf16.mxu0 %v458
    %732 = vmatpush1.bf16.msra.mxu0 %v457
    %733 = vmatprep.subr.bf16.mxu0 %v464
    %734 = vmatpush1.bf16.msra.mxu0 %v463
    %735 = vmatprep.subr.bf16.mxu0 %v470
    %736 = vmatpush1.bf16.msra.mxu0 %v469
    %737 = vmatprep.subr.bf16.mxu0 %v476
    %738 = vmatpush1.bf16.msra.mxu0 %v475
    %739 = vmatprep.subr.bf16.mxu0 %v482
    %740 = vmatpush1.bf16.msra.mxu0 %v481
    %741 = vmatprep.subr.bf16.mxu0 %v488
    %742 = vmatpush1.bf16.msra.mxu0 %v487
    %743 = vmatprep.subr.bf16.mxu0 %v494
    %744 = vmatpush1.bf16.msra.mxu0 %v493
    %745 = vmatprep.subr.bf16.mxu0 %v500
    %746 = vmatpush1.bf16.msra.mxu0 %v499
    %747 = vmatprep.subr.bf16.mxu0 %v506
    %748 = vmatpush1.bf16.msra.mxu0 %v505
    %749 = vmatprep.subr.bf16.mxu0 %v512
    %750 = vmatpush1.bf16.msra.mxu0 %v511
    %751 = vmatprep.subr.bf16.mxu0 %v518
    %752 = vmatpush1.bf16.msra.mxu0 %v517
    %753 = vmatprep.subr.bf16.mxu0 %v524
    %754 = vmatpush1.bf16.msra.mxu0 %v523
    %755 = vmatprep.subr.bf16.mxu0 %v530
    %756 = vmatpush1.bf16.msra.mxu0 %v529
    %757 = vmatprep.subr.bf16.mxu0 %v536
    %758 = vmatpush1.bf16.msra.mxu0 %v535
    %759 = vmatprep.subr.bf16.mxu0 %v542
    %760 = vmatpush1.bf16.msra.mxu0 %v541
    %761 = vmatprep.subr.bf16.mxu0 %v548
    %762 = vmatpush1.bf16.msra.mxu0 %v547
    %763 = vmatprep.mubr.bf16.mxu0 %v68
    %764 = vmatmul.mubr.bf16.gmra.mrb[0].mxu0 %v67
    %v765 = vpop.f32.mrb[0].mxu0
    %v766 = vadd.f32 0.0, %v765
    %v767 = vpop.f32.mrb[0].mxu0
    %v768 = vadd.f32 0.0, %v767
    %v769 = vpop.f32.mrb[0].mxu0
    %v770 = vadd.f32 0.0, %v769
    %v771 = vpop.f32.mrb[0].mxu0
    %v772 = vadd.f32 0.0, %v771
    %773 = vdwg.mxu0
    %v774 = vpack.c.bf16 %v684, %v680
    %v775 = vpack.c.bf16 %v686, %v682
    %v776 = vpack.c.bf16 %v727, %v723
    %v777 = vpack.c.bf16 %v729, %v725
    %v778 = vpack.c.bf16 %v770, %v766
    %v779 = vpack.c.bf16 %v772, %v768
    %v780 = vld [vmem:[#allocation5] sm:$0xf]
    %v781 = vld [vmem:[#allocation5 + $0x4] sm:$0xf]
    %v782 = vld [vmem:[#allocation5 + $0x8] sm:$0xf]
    %v783 = vld [vmem:[#allocation5 + $0xc] sm:$0xf]
    %v784 = vld [vmem:[#allocation5 + $0x10] sm:$0xf]
    %v785 = vld [vmem:[#allocation5 + $0x14] sm:$0xf]
    %v786 = vld [vmem:[#allocation5 + $0x18] sm:$0xf]
    %v787 = vld [vmem:[#allocation5 + $0x1c] sm:$0xf]
    %v788 = vld [vmem:[#allocation5 + $0x20] sm:$0xf]
    %v789 = vld [vmem:[#allocation5 + $0x24] sm:$0xf]
    %v790 = vld [vmem:[#allocation5 + $0x28] sm:$0xf]
    %v791 = vld [vmem:[#allocation5 + $0x2c] sm:$0xf]
    %v792 = vld [vmem:[#allocation5 + $0x30] sm:$0xf]
    %v793 = vld [vmem:[#allocation5 + $0x34] sm:$0xf]
    %v794 = vld [vmem:[#allocation5 + $0x38] sm:$0xf]
    %v795 = vld [vmem:[#allocation5 + $0x3c] sm:$0xf]
    %v796 = vld [vmem:[#allocation5 + $0x40] sm:$0xf]
    %v797 = vld [vmem:[#allocation5 + $0x44] sm:$0xf]
    %v798 = vld [vmem:[#allocation5 + $0x48] sm:$0xf]
    %v799 = vld [vmem:[#allocation5 + $0x4c] sm:$0xf]
    %v800 = vld [vmem:[#allocation5 + $0x50] sm:$0xf]
    %v801 = vld [vmem:[#allocation5 + $0x54] sm:$0xf]
    %v802 = vld [vmem:[#allocation5 + $0x58] sm:$0xf]
    %v803 = vld [vmem:[#allocation5 + $0x5c] sm:$0xf]
    %v804 = vld [vmem:[#allocation5 + $0x60] sm:$0xf]
    %v805 = vld [vmem:[#allocation5 + $0x64] sm:$0xf]
    %v806 = vld [vmem:[#allocation5 + $0x68] sm:$0xf]
    %v807 = vld [vmem:[#allocation5 + $0x6c] sm:$0xf]
    %v808 = vld [vmem:[#allocation5 + $0x70] sm:$0xf]
    %v809 = vld [vmem:[#allocation5 + $0x74] sm:$0xf]
    %v810 = vld [vmem:[#allocation5 + $0x78] sm:$0xf]
    %v811 = vld [vmem:[#allocation5 + $0x7c] sm:$0xf]
    %v812 = vld [vmem:[#allocation5 + $0x80] sm:$0xf]
    %v813 = vld [vmem:[#allocation5 + $0x84] sm:$0xf]
    %v814 = vld [vmem:[#allocation5 + $0x88] sm:$0xf]
    %v815 = vld [vmem:[#allocation5 + $0x8c] sm:$0xf]
    %v816 = vld [vmem:[#allocation5 + $0x90] sm:$0xf]
    %v817 = vld [vmem:[#allocation5 + $0x94] sm:$0xf]
    %v818 = vld [vmem:[#allocation5 + $0x98] sm:$0xf]
    %v819 = vld [vmem:[#allocation5 + $0x9c] sm:$0xf]
    %v820 = vld [vmem:[#allocation5 + $0xa0] sm:$0xf]
    %v821 = vld [vmem:[#allocation5 + $0xa4] sm:$0xf]
    %v822 = vld [vmem:[#allocation5 + $0xa8] sm:$0xf]
    %v823 = vld [vmem:[#allocation5 + $0xac] sm:$0xf]
    %v824 = vld [vmem:[#allocation5 + $0xb0] sm:$0xf]
    %v825 = vld [vmem:[#allocation5 + $0xb4] sm:$0xf]
    %v826 = vld [vmem:[#allocation5 + $0xb8] sm:$0xf]
    %v827 = vld [vmem:[#allocation5 + $0xbc] sm:$0xf]
    %v828 = vld [vmem:[#allocation5 + $0xc0] sm:$0xf]
    %v829 = vld [vmem:[#allocation5 + $0xc4] sm:$0xf]
    %v830 = vld [vmem:[#allocation5 + $0xc8] sm:$0xf]
    %v831 = vld [vmem:[#allocation5 + $0xcc] sm:$0xf]
    %v832 = vld [vmem:[#allocation5 + $0xd0] sm:$0xf]
    %v833 = vld [vmem:[#allocation5 + $0xd4] sm:$0xf]
    %v834 = vld [vmem:[#allocation5 + $0xd8] sm:$0xf]
    %v835 = vld [vmem:[#allocation5 + $0xdc] sm:$0xf]
    %v836 = vld [vmem:[#allocation5 + $0xe0] sm:$0xf]
    %v837 = vld [vmem:[#allocation5 + $0xe4] sm:$0xf]
    %v838 = vld [vmem:[#allocation5 + $0xe8] sm:$0xf]
    %v839 = vld [vmem:[#allocation5 + $0xec] sm:$0xf]
    %v840 = vld [vmem:[#allocation5 + $0xf0] sm:$0xf]
    %v841 = vld [vmem:[#allocation5 + $0xf4] sm:$0xf]
    %v842 = vld [vmem:[#allocation5 + $0xf8] sm:$0xf]
    %v843 = vld [vmem:[#allocation5 + $0xfc] sm:$0xf]
    %v844 = vld [vmem:[#allocation5 + $0x100] sm:$0xf]
    %v845 = vld [vmem:[#allocation5 + $0x104] sm:$0xf]
    %v846 = vld [vmem:[#allocation5 + $0x108] sm:$0xf]
    %v847 = vld [vmem:[#allocation5 + $0x10c] sm:$0xf]
    %v848 = vld [vmem:[#allocation5 + $0x110] sm:$0xf]
    %v849 = vld [vmem:[#allocation5 + $0x114] sm:$0xf]
    %v850 = vld [vmem:[#allocation5 + $0x118] sm:$0xf]
    %v851 = vld [vmem:[#allocation5 + $0x11c] sm:$0xf]
    %v852 = vld [vmem:[#allocation5 + $0x120] sm:$0xf]
    %v853 = vld [vmem:[#allocation5 + $0x124] sm:$0xf]
    %v854 = vld [vmem:[#allocation5 + $0x128] sm:$0xf]
    %v855 = vld [vmem:[#allocation5 + $0x12c] sm:$0xf]
    %v856 = vld [vmem:[#allocation5 + $0x130] sm:$0xf]
    %v857 = vld [vmem:[#allocation5 + $0x134] sm:$0xf]
    %v858 = vld [vmem:[#allocation5 + $0x138] sm:$0xf]
    %v859 = vld [vmem:[#allocation5 + $0x13c] sm:$0xf]
    %v860 = vld [vmem:[#allocation5 + $0x140] sm:$0xf]
    %v861 = vld [vmem:[#allocation5 + $0x144] sm:$0xf]
    %v862 = vld [vmem:[#allocation5 + $0x148] sm:$0xf]
    %v863 = vld [vmem:[#allocation5 + $0x14c] sm:$0xf]
    %v864 = vld [vmem:[#allocation5 + $0x150] sm:$0xf]
    %v865 = vld [vmem:[#allocation5 + $0x154] sm:$0xf]
    %v866 = vld [vmem:[#allocation5 + $0x158] sm:$0xf]
    %v867 = vld [vmem:[#allocation5 + $0x15c] sm:$0xf]
    %v868 = vld [vmem:[#allocation5 + $0x160] sm:$0xf]
    %v869 = vld [vmem:[#allocation5 + $0x164] sm:$0xf]
    %v870 = vld [vmem:[#allocation5 + $0x168] sm:$0xf]
    %v871 = vld [vmem:[#allocation5 + $0x16c] sm:$0xf]
    %v872 = vld [vmem:[#allocation5 + $0x170] sm:$0xf]
    %v873 = vld [vmem:[#allocation5 + $0x174] sm:$0xf]
    %v874 = vld [vmem:[#allocation5 + $0x178] sm:$0xf]
    %v875 = vld [vmem:[#allocation5 + $0x17c] sm:$0xf]
    %v972 = vunpack.c.l.b16 %v780
    %v973 = vunpack.c.l.b16 %v781
    %v974 = vunpack.c.l.b16 %v782
    %v975 = vunpack.c.l.b16 %v783
    %v976 = vunpack.c.l.b16 %v784
    %v977 = vunpack.c.l.b16 %v785
    %v978 = vunpack.c.l.b16 %v786
    %v979 = vunpack.c.l.b16 %v787
    %v980 = vunpack.c.l.b16 %v788
    %v981 = vunpack.c.l.b16 %v789
    %v982 = vunpack.c.l.b16 %v790
    %v983 = vunpack.c.l.b16 %v791
    %v984 = vunpack.c.l.b16 %v792
    %v985 = vunpack.c.l.b16 %v793
    %v986 = vunpack.c.l.b16 %v794
    %v987 = vunpack.c.l.b16 %v795
    %v988 = vunpack.c.l.b16 %v796
    %v989 = vunpack.c.l.b16 %v797
    %v990 = vunpack.c.l.b16 %v798
    %v991 = vunpack.c.l.b16 %v799
    %v992 = vunpack.c.l.b16 %v800
    %v993 = vunpack.c.l.b16 %v801
    %v994 = vunpack.c.l.b16 %v802
    %v995 = vunpack.c.l.b16 %v803
    %v996 = vunpack.c.l.b16 %v804
    %v997 = vunpack.c.l.b16 %v805
    %v998 = vunpack.c.l.b16 %v806
    %v999 = vunpack.c.l.b16 %v807
    %v1000 = vunpack.c.l.b16 %v808
    %v1001 = vunpack.c.l.b16 %v809
    %v1002 = vunpack.c.l.b16 %v810
    %v1003 = vunpack.c.l.b16 %v811
    %v1004 = vunpack.c.l.b16 %v812
    %v1005 = vunpack.c.l.b16 %v813
    %v1006 = vunpack.c.l.b16 %v814
    %v1007 = vunpack.c.l.b16 %v815
    %v1008 = vunpack.c.l.b16 %v816
    %v1009 = vunpack.c.l.b16 %v817
    %v1010 = vunpack.c.l.b16 %v818
    %v1011 = vunpack.c.l.b16 %v819
    %v1012 = vunpack.c.l.b16 %v820
    %v1013 = vunpack.c.l.b16 %v821
    %v1014 = vunpack.c.l.b16 %v822
    %v1015 = vunpack.c.l.b16 %v823
    %v1016 = vunpack.c.l.b16 %v824
    %v1017 = vunpack.c.l.b16 %v825
    %v1018 = vunpack.c.l.b16 %v826
    %v1019 = vunpack.c.l.b16 %v827
    %v1020 = vunpack.c.l.b16 %v828
    %v1021 = vunpack.c.l.b16 %v829
    %v1022 = vunpack.c.l.b16 %v830
    %v1023 = vunpack.c.l.b16 %v831
    %v1024 = vunpack.c.l.b16 %v832
    %v1025 = vunpack.c.l.b16 %v833
    %v1026 = vunpack.c.l.b16 %v834
    %v1027 = vunpack.c.l.b16 %v835
    %v1028 = vunpack.c.l.b16 %v836
    %v1029 = vunpack.c.l.b16 %v837
    %v1030 = vunpack.c.l.b16 %v838
    %v1031 = vunpack.c.l.b16 %v839
    %v1032 = vunpack.c.l.b16 %v840
    %v1033 = vunpack.c.l.b16 %v841
    %v1034 = vunpack.c.l.b16 %v842
    %v1035 = vunpack.c.l.b16 %v843
    %v1036 = vunpack.c.l.b16 %v844
    %v1037 = vunpack.c.l.b16 %v845
    %v1038 = vunpack.c.l.b16 %v846
    %v1039 = vunpack.c.l.b16 %v847
    %v1040 = vunpack.c.l.b16 %v848
    %v1041 = vunpack.c.l.b16 %v849
    %v1042 = vunpack.c.l.b16 %v850
    %v1043 = vunpack.c.l.b16 %v851
    %v1044 = vunpack.c.l.b16 %v852
    %v1045 = vunpack.c.l.b16 %v853
    %v1046 = vunpack.c.l.b16 %v854
    %v1047 = vunpack.c.l.b16 %v855
    %v1048 = vunpack.c.l.b16 %v856
    %v1049 = vunpack.c.l.b16 %v857
    %v1050 = vunpack.c.l.b16 %v858
    %v1051 = vunpack.c.l.b16 %v859
    %v1052 = vunpack.c.l.b16 %v860
    %v1053 = vunpack.c.l.b16 %v861
    %v1054 = vunpack.c.l.b16 %v862
    %v1055 = vunpack.c.l.b16 %v863
    %v1056 = vunpack.c.l.b16 %v864
    %v1057 = vunpack.c.l.b16 %v865
    %v1058 = vunpack.c.l.b16 %v866
    %v1059 = vunpack.c.l.b16 %v867
    %v1060 = vunpack.c.l.b16 %v868
    %v1061 = vunpack.c.l.b16 %v869
    %v1062 = vunpack.c.l.b16 %v870
    %v1063 = vunpack.c.l.b16 %v871
    %v1064 = vunpack.c.l.b16 %v872
    %v1065 = vunpack.c.l.b16 %v873
    %v1066 = vunpack.c.l.b16 %v874
    %v1067 = vunpack.c.l.b16 %v875
    %v1068 = vpack.c.b16 %v973, %v972
    %v1069 = vpack.c.b16 %v975, %v974
    %v1070 = vpack.c.b16 %v977, %v976
    %v1071 = vpack.c.b16 %v979, %v978
    %v1072 = vpack.c.b16 %v981, %v980
    %v1073 = vpack.c.b16 %v983, %v982
    %v1074 = vpack.c.b16 %v985, %v984
    %v1075 = vpack.c.b16 %v987, %v986
    %v1076 = vpack.c.b16 %v989, %v988
    %v1077 = vpack.c.b16 %v991, %v990
    %v1078 = vpack.c.b16 %v993, %v992
    %v1079 = vpack.c.b16 %v995, %v994
    %v1080 = vpack.c.b16 %v997, %v996
    %v1081 = vpack.c.b16 %v999, %v998
    %v1082 = vpack.c.b16 %v1001, %v1000
    %v1083 = vpack.c.b16 %v1003, %v1002
    %v1084 = vpack.c.b16 %v1005, %v1004
    %v1085 = vpack.c.b16 %v1007, %v1006
    %v1086 = vpack.c.b16 %v1009, %v1008
    %v1087 = vpack.c.b16 %v1011, %v1010
    %v1088 = vpack.c.b16 %v1013, %v1012
    %v1089 = vpack.c.b16 %v1015, %v1014
    %v1090 = vpack.c.b16 %v1017, %v1016
    %v1091 = vpack.c.b16 %v1019, %v1018
    %v1092 = vpack.c.b16 %v1021, %v1020
    %v1093 = vpack.c.b16 %v1023, %v1022
    %v1094 = vpack.c.b16 %v1025, %v1024
    %v1095 = vpack.c.b16 %v1027, %v1026
    %v1096 = vpack.c.b16 %v1029, %v1028
    %v1097 = vpack.c.b16 %v1031, %v1030
    %v1098 = vpack.c.b16 %v1033, %v1032
    %v1099 = vpack.c.b16 %v1035, %v1034
    %v1100 = vpack.c.b16 %v1037, %v1036
    %v1101 = vpack.c.b16 %v1039, %v1038
    %v1102 = vpack.c.b16 %v1041, %v1040
    %v1103 = vpack.c.b16 %v1043, %v1042
    %v1104 = vpack.c.b16 %v1045, %v1044
    %v1105 = vpack.c.b16 %v1047, %v1046
    %v1106 = vpack.c.b16 %v1049, %v1048
    %v1107 = vpack.c.b16 %v1051, %v1050
    %v1108 = vpack.c.b16 %v1053, %v1052
    %v1109 = vpack.c.b16 %v1055, %v1054
    %v1110 = vpack.c.b16 %v1057, %v1056
    %v1111 = vpack.c.b16 %v1059, %v1058
    %v1112 = vpack.c.b16 %v1061, %v1060
    %v1113 = vpack.c.b16 %v1063, %v1062
    %v1114 = vpack.c.b16 %v1065, %v1064
    %v1115 = vpack.c.b16 %v1067, %v1066
    %1164 = vmatprep.subr.bf16.mxu0 0
    %1165 = vmatpush1.bf16.msra.mxu0 %v1068
    %1166 = vmatprep.subr.bf16.mxu0 0
    %1167 = vmatpush1.bf16.msra.mxu0 %v1069
    %1168 = vmatprep.subr.bf16.mxu0 0
    %1169 = vmatpush1.bf16.msra.mxu0 %v1070
    %1170 = vmatprep.subr.bf16.mxu0 0
    %1171 = vmatpush1.bf16.msra.mxu0 %v1071
    %1172 = vmatprep.subr.bf16.mxu0 0
    %1173 = vmatpush1.bf16.msra.mxu0 %v1072
    %1174 = vmatprep.subr.bf16.mxu0 0
    %1175 = vmatpush1.bf16.msra.mxu0 %v1073
    %1176 = vmatprep.subr.bf16.mxu0 0
    %1177 = vmatpush1.bf16.msra.mxu0 %v1074
    %1178 = vmatprep.subr.bf16.mxu0 0
    %1179 = vmatpush1.bf16.msra.mxu0 %v1075
    %1180 = vmatprep.subr.bf16.mxu0 0
    %1181 = vmatpush1.bf16.msra.mxu0 %v1076
    %1182 = vmatprep.subr.bf16.mxu0 0
    %1183 = vmatpush1.bf16.msra.mxu0 %v1077
    %1184 = vmatprep.subr.bf16.mxu0 0
    %1185 = vmatpush1.bf16.msra.mxu0 %v1078
    %1186 = vmatprep.subr.bf16.mxu0 0
    %1187 = vmatpush1.bf16.msra.mxu0 %v1079
    %1188 = vmatprep.subr.bf16.mxu0 0
    %1189 = vmatpush1.bf16.msra.mxu0 %v1080
    %1190 = vmatprep.subr.bf16.mxu0 0
    %1191 = vmatpush1.bf16.msra.mxu0 %v1081
    %1192 = vmatprep.subr.bf16.mxu0 0
    %1193 = vmatpush1.bf16.msra.mxu0 %v1082
    %1194 = vmatprep.subr.bf16.mxu0 0
    %1195 = vmatpush1.bf16.msra.mxu0 %v1083
    %1196 = vmatprep.mubr.bf16.mxu0 %v775
    %1197 = vmatmul.mubr.bf16.gmra.mrb[0].mxu0 %v774
    %v1198 = vpop.f32.mrb[0].mxu0
    %v1199 = vadd.f32 0.0, %v1198
    %v1200 = vpop.f32.mrb[0].mxu0
    %v1201 = vpop.f32.mrb[0].mxu0
    %v1202 = vadd.f32 0.0, %v1201
    %v1203 = vpop.f32.mrb[0].mxu0
    %1204 = vdwg.mxu0
    %1205 = vmatprep.subr.bf16.mxu0 0
    %1206 = vmatpush1.bf16.msra.mxu0 %v1084
    %1207 = vmatprep.subr.bf16.mxu0 0
    %1208 = vmatpush1.bf16.msra.mxu0 %v1085
    %1209 = vmatprep.subr.bf16.mxu0 0
    %1210 = vmatpush1.bf16.msra.mxu0 %v1086
    %1211 = vmatprep.subr.bf16.mxu0 0
    %1212 = vmatpush1.bf16.msra.mxu0 %v1087
    %1213 = vmatprep.subr.bf16.mxu0 0
    %1214 = vmatpush1.bf16.msra.mxu0 %v1088
    %1215 = vmatprep.subr.bf16.mxu0 0
    %1216 = vmatpush1.bf16.msra.mxu0 %v1089
    %1217 = vmatprep.subr.bf16.mxu0 0
    %1218 = vmatpush1.bf16.msra.mxu0 %v1090
    %1219 = vmatprep.subr.bf16.mxu0 0
    %1220 = vmatpush1.bf16.msra.mxu0 %v1091
    %1221 = vmatprep.subr.bf16.mxu0 0
    %1222 = vmatpush1.bf16.msra.mxu0 %v1092
    %1223 = vmatprep.subr.bf16.mxu0 0
    %1224 = vmatpush1.bf16.msra.mxu0 %v1093
    %1225 = vmatprep.subr.bf16.mxu0 0
    %1226 = vmatpush1.bf16.msra.mxu0 %v1094
    %1227 = vmatprep.subr.bf16.mxu0 0
    %1228 = vmatpush1.bf16.msra.mxu0 %v1095
    %1229 = vmatprep.subr.bf16.mxu0 0
    %1230 = vmatpush1.bf16.msra.mxu0 %v1096
    %1231 = vmatprep.subr.bf16.mxu0 0
    %1232 = vmatpush1.bf16.msra.mxu0 %v1097
    %1233 = vmatprep.subr.bf16.mxu0 0
    %1234 = vmatpush1.bf16.msra.mxu0 %v1098
    %1235 = vmatprep.subr.bf16.mxu0 0
    %1236 = vmatpush1.bf16.msra.mxu0 %v1099
    %1237 = vmatprep.mubr.bf16.mxu0 %v777
    %1238 = vmatmul.mubr.bf16.gmra.mrb[0].mxu0 %v776
    %v1239 = vpop.f32.mrb[0].mxu0
    %v1240 = vadd.f32 %v1199, %v1239
    %v1241 = vpop.f32.mrb[0].mxu0
    %v1242 = vpop.f32.mrb[0].mxu0
    %v1243 = vadd.f32 %v1202, %v1242
    %v1244 = vpop.f32.mrb[0].mxu0
    %1245 = vdwg.mxu0
    %1246 = vmatprep.subr.bf16.mxu0 0
    %1247 = vmatpush1.bf16.msra.mxu0 %v1100
    %1248 = vmatprep.subr.bf16.mxu0 0
    %1249 = vmatpush1.bf16.msra.mxu0 %v1101
    %1250 = vmatprep.subr.bf16.mxu0 0
    %1251 = vmatpush1.bf16.msra.mxu0 %v1102
    %1252 = vmatprep.subr.bf16.mxu0 0
    %1253 = vmatpush1.bf16.msra.mxu0 %v1103
    %1254 = vmatprep.subr.bf16.mxu0 0
    %1255 = vmatpush1.bf16.msra.mxu0 %v1104
    %1256 = vmatprep.subr.bf16.mxu0 0
    %1257 = vmatpush1.bf16.msra.mxu0 %v1105
    %1258 = vmatprep.subr.bf16.mxu0 0
    %1259 = vmatpush1.bf16.msra.mxu0 %v1106
    %1260 = vmatprep.subr.bf16.mxu0 0
    %1261 = vmatpush1.bf16.msra.mxu0 %v1107
    %1262 = vmatprep.subr.bf16.mxu0 0
    %1263 = vmatpush1.bf16.msra.mxu0 %v1108
    %1264 = vmatprep.subr.bf16.mxu0 0
    %1265 = vmatpush1.bf16.msra.mxu0 %v1109
    %1266 = vmatprep.subr.bf16.mxu0 0
    %1267 = vmatpush1.bf16.msra.mxu0 %v1110
    %1268 = vmatprep.subr.bf16.mxu0 0
    %1269 = vmatpush1.bf16.msra.mxu0 %v1111
    %1270 = vmatprep.subr.bf16.mxu0 0
    %1271 = vmatpush1.bf16.msra.mxu0 %v1112
    %1272 = vmatprep.subr.bf16.mxu0 0
    %1273 = vmatpush1.bf16.msra.mxu0 %v1113
    %1274 = vmatprep.subr.bf16.mxu0 0
    %1275 = vmatpush1.bf16.msra.mxu0 %v1114
    %1276 = vmatprep.subr.bf16.mxu0 0
    %1277 = vmatpush1.bf16.msra.mxu0 %v1115
    %1278 = vmatprep.mubr.bf16.mxu0 %v779
    %1279 = vmatmul.mubr.bf16.gmra.mrb[0].mxu0 %v778
    %v1280 = vpop.f32.mrb[0].mxu0
    %v1281 = vadd.f32 %v1240, %v1280
    %v1282 = vpop.f32.mrb[0].mxu0
    %v1283 = vpop.f32.mrb[0].mxu0
    %v1284 = vadd.f32 %v1243, %v1283
    %v1285 = vpop.f32.mrb[0].mxu0
    %1286 = vdwg.mxu0
    %1287 = vst [vmem:[#allocation7] sm:$0xff] %v1281
    %1288 = vst [vmem:[#allocation7 + $0x8] sm:$0xff] %v1284
    // Predicated region
    $region22: #{to_small_emb_forward.1} parent=1 // pred_check
      _
    $region23: #{to_small_emb_forward.1} parent=1 // pred_check_branch
      %1290 = sbr.rel (0) target = $region25
    $region24: #{to_small_emb_forward.1} parent=1 // pred_region
      %s1292 = ssub.s32 256, 256
      %1293 = vsyncadd [#allocation4], %s1292
      %s1294 = sshll.u32 [#allocation7], 4
      %s1295 = int_to_ptr.vmem [resolvable:$true] %s1294
      %1300 = dma.vmem_to_hbm [thread:$0]  %s1295, 256, %s3, [#allocation4], 128, 128, 8
    $region25: #{to_small_emb_forward.1} parent=1 // pred_fallthru
      _
    // Predicated region
    $region26: #{to_small_emb_forward.1} parent=1 // pred_check
      _
    $region27: #{to_small_emb_forward.1} parent=1 // pred_check_branch
      %1302 = sbr.rel (0) target = $region29
    $region28: #{to_small_emb_forward.1} parent=1 // pred_region
      %1303 = dma.done [#allocation4], 256
    $region29: #{to_small_emb_forward.1} parent=1 // pred_fallthru
      _
    %1304 = vsyncpa [#allocation3], 1
    %1305 = vsyncpa [#allocation6], 1
    %1306 = vsyncpa [#allocation4], 1

</llo_original>
